<compile_context>
chip_gen: v7x
topology: tpu7x:2x2x1
jax: 0.10.0
libtpu: 0.0.40
codegen_flags: <defaults>
</compile_context>

<pallas_src>
import functools

import jax
import jax.numpy as jnp
from jax import lax
from jax.experimental import pallas as pl
from jax.experimental.pallas import tpu as pltpu

BND = 1.4
_LANE = 128


def _my_loss_kernel(logits_ref, tag_ref, sign_ref, out_ref, acc_ref, *, n_rows, bnd):
    i = pl.program_id(0)

    @pl.when(i == 0)
    def _init():
        acc_ref[...] = jnp.zeros_like(acc_ref)

    logits = logits_ref[...].astype(jnp.float32)                   # (TN, C)
    tn, c = logits.shape

    # numerically-stable log-sum-exp along the class (lane) axis
    m = jnp.max(logits, axis=-1, keepdims=True)                    # (TN, 1)
    lse = jnp.log(jnp.sum(jnp.exp(logits - m), axis=-1, keepdims=True))

    # per-sample cross entropy without materializing log_probs:
    #   ce_i = logsumexp(logits_i) - logits_i[tag_i]
    tag = tag_ref[...]                                             # (TN, 1) i32
    cols = lax.broadcasted_iota(jnp.int32, (tn, c), 1)
    picked = jnp.sum(jnp.where(cols == tag, logits, 0.0), axis=-1, keepdims=True)
    ce = (m + lse) - picked                                        # (TN, 1)

    sign = sign_ref[...]                                           # (TN, 1) f32
    hinge = jnp.maximum(jnp.float32(bnd) - sign * ce, 0.0)         # (TN, 1)

    # Mask rows of a partial last tile (jnp.where so any garbage/NaN in the
    # padded region of the block cannot leak into the sum).
    rows = i * tn + lax.broadcasted_iota(jnp.int32, (tn, 1), 0)
    hinge = jnp.where(rows < n_rows, hinge, 0.0)

    acc_ref[...] += jnp.sum(hinge, keepdims=True)                  # (1, 1)

    @pl.when(i == pl.num_programs(0) - 1)
    def _finalize():
        out_ref[...] = acc_ref[...]


def _choose_block_n(n, c, itemsize, requested=None):
    if requested is not None:
        bn = int(requested)
    else:
        # ~4 MiB per (double-buffered) logits block: safe within v5e's 16 MiB
        # default scoped VMEM and v7x's 64 MiB physical VMEM.
        per_row = max(c, _LANE) * itemsize                         # lane-padded row
        bn = int((4 * 1024 * 1024) // per_row)
        bn = min(bn, 2048)
    if bn >= n:
        return n                     # single full-array block (always legal)
    bn = max(8, bn - bn % 8)         # tiled path: multiple of 8 sublanes, <= n
    return min(bn, n)


def my_loss(output, labels, param_now=None, param_old=None, *, block_n=None):
    """output: (N, C) float32/bfloat16 logits; labels: (N, 2) int [tag, abnormal]."""
    n, c = output.shape
    itemsize = jnp.dtype(output.dtype).itemsize

    block_n = _choose_block_n(n, c, itemsize, block_n)
    grid_n = pl.cdiv(n, block_n)

    labels = labels.astype(jnp.int32)
    tag = labels[:, 0:1]                                                   # (N, 1) i32
    sign = jnp.where(labels[:, 1:2] == 0, -1.0, 1.0).astype(jnp.float32)   # (N, 1) f32

    # VMEM budget: lane-padded, double-buffered inputs + headroom.
    c_pad = ((c + _LANE - 1) // _LANE) * _LANE
    need = (2 * block_n * c_pad * itemsize          # logits double buffer
            + 4 * block_n * _LANE * 4               # tag + sign double buffers
            + (1 << 20))                            # scratch / out / internal headroom
    vmem_limit = int(min(max(2 * need, 8 << 20), 96 << 20))

    kernel = functools.partial(_my_loss_kernel, n_rows=n, bnd=BND)

    return pl.pallas_call(
        kernel,
        out_shape=jax.ShapeDtypeStruct((1, 1), jnp.float32),
        grid_spec=pltpu.PrefetchScalarGridSpec(
            num_scalar_prefetch=0,
            grid=(grid_n,),
            in_specs=[
                pl.BlockSpec((block_n, c), lambda i: (i, 0)),
                pl.BlockSpec((block_n, 1), lambda i: (i, 0)),
                pl.BlockSpec((block_n, 1), lambda i: (i, 0)),
            ],
            out_specs=pl.BlockSpec((1, 1), lambda i: (0, 0)),
            scratch_shapes=[pltpu.VMEM((1, 1), jnp.float32)],
        ),
        compiler_params=pltpu.CompilerParams(
            dimension_semantics=("arbitrary",),     # accumulator carried across tiles
            vmem_limit_bytes=vmem_limit,
        ),
        cost_estimate=pl.CostEstimate(
            flops=6 * n * c,
            transcendentals=n * c,
            bytes_accessed=n * c * itemsize + n * 8 + 4,
        ),
    )(output, tag, sign)


def _reference(output, labels):
    log_probs = jax.nn.log_softmax(output.astype(jnp.float32), axis=-1)
    ce = -jnp.take_along_axis(log_probs, labels[:, 0:1].astype(jnp.int32), axis=-1)[:, 0]
    sign = jnp.where(labels[:, 1] == 0, -1.0, 1.0)
    return jnp.sum(jnp.maximum(BND - sign * ce, 0.0)).reshape(1, 1)


if __name__ == "__main__":
    key = jax.random.PRNGKey(0)
    k_out, k_tag, k_abn, k_param = jax.random.split(key, 4)

    N, C = 300, 16  # small log-key-style vocabulary, few hundred samples
    output = jax.random.normal(k_out, (N, C), dtype=jnp.float32)
    tag = jax.random.randint(k_tag, (N,), 0, C, dtype=jnp.int32)
    abnormal = jax.random.randint(k_abn, (N,), 0, 2, dtype=jnp.int32)
    labels = jnp.stack([tag, abnormal], axis=1)                      # (N, 2) int32

    # Unused module parameters (kept for API parity with the nn.Module).
    # TODO(synk): param_old/param_now are never used in the module's forward.
    param_old = jax.random.normal(k_param, (32, 32), dtype=jnp.float32)
    param_now = param_old + 0.01

    ref = _reference(output, labels)

    # Default tile (single full block for this small demo).
    res_default = jax.block_until_ready(my_loss(output, labels, param_now, param_old))
    # Forced multi-tile path: grid = 3, partial last tile masked in-kernel.
    res_tiled = jax.block_until_ready(
        my_loss(output, labels, param_now, param_old, block_n=128))

    assert res_default.shape == (1, 1) and res_tiled.shape == (1, 1)
    assert jnp.allclose(res_default, ref, rtol=1e-4, atol=1e-3), (res_default, ref)
    assert jnp.allclose(res_tiled, ref, rtol=1e-4, atol=1e-3), (res_tiled, ref)

    print("KERNEL_OK")
</pallas_src>

<mosaic_0001>
module attributes {stable_mosaic.version = 11 : i64} {
  func.func @_my_loss_kernel(%arg0: i32, %arg1: memref<300x16xf32, #tpu.memory_space<vmem>>, %arg2: memref<300x1xi32, #tpu.memory_space<vmem>>, %arg3: memref<300x1xf32, #tpu.memory_space<vmem>>, %arg4: memref<1x1xf32, #tpu.memory_space<vmem>>, %arg5: memref<1x1xf32, #tpu.memory_space<vmem>>) attributes {dimension_semantics = [#tpu.dimension_semantics<arbitrary>], iteration_bounds = array<i64: 1>, scalar_prefetch = 0 : i64, scratch_operands = 1 : i64, tpu.core_type = #tpu.core_type<tc>, window_params = [{transform_indices = @transform_0, window_bounds = array<i64: 300, 16>}, {transform_indices = @transform_1, window_bounds = array<i64: 300, 1>}, {transform_indices = @transform_2, window_bounds = array<i64: 300, 1>}, {pipeline_mode = #tpu.pipeline_mode<synchronous>, transform_indices = @transform_3, window_bounds = array<i64: 1, 1>}]} {
    %c0_i32 = arith.constant 0 : i32
    %0 = arith.cmpi eq, %arg0, %c0_i32 : i32
    %1 = arith.extui %0 : i1 to i32
    %c0_i32_0 = arith.constant 0 : i32
    %2 = arith.cmpi ne, %1, %c0_i32_0 : i32
    scf.if %2 {
      %cst_20 = arith.constant 0.000000e+00 : f32
      %47 = vector.broadcast %cst_20 : f32 to vector<1x1xf32>
      %c0_21 = arith.constant 0 : index
      %c0_22 = arith.constant 0 : index
      %48 = vector.load %arg5[%c0_21, %c0_22] : memref<1x1xf32, #tpu.memory_space<vmem>>, vector<1x1xf32>
      tpu.vector_store %arg5[%c0_21, %c0_22], %47 {strides = array<i32>} : memref<1x1xf32, #tpu.memory_space<vmem>>, vector<1x1xf32>,
    } else {
    }
    %c0 = arith.constant 0 : index
    %c0_1 = arith.constant 0 : index
    %3 = vector.load %arg1[%c0, %c0_1] : memref<300x16xf32, #tpu.memory_space<vmem>>, vector<300x16xf32>
    %cst = arith.constant dense<0xFF800000> : vector<300xf32>
    %4 = vector.multi_reduction <maximumf>, %3, %cst [1] : vector<300x16xf32> to vector<300xf32>
    %5 = vector.shape_cast %4 : vector<300xf32> to vector<300x1xf32>
    %6 = vector.broadcast %5 : vector<300x1xf32> to vector<300x16xf32>
    %7 = arith.subf %3, %6 : vector<300x16xf32>
    %8 = math.exp %7 : vector<300x16xf32>
    %cst_2 = arith.constant dense<0.000000e+00> : vector<300xf32>
    %9 = vector.multi_reduction <add>, %8, %cst_2 [1] : vector<300x16xf32> to vector<300xf32>
    %10 = vector.shape_cast %9 : vector<300xf32> to vector<300x1xf32>
    %11 = math.log %10 : vector<300x1xf32>
    %c0_3 = arith.constant 0 : index
    %c0_4 = arith.constant 0 : index
    %12 = vector.load %arg2[%c0_3, %c0_4] : memref<300x1xi32, #tpu.memory_space<vmem>>, vector<300x1xi32>
    %13 = tpu.iota {dimensions = array<i32: 1>} : vector<300x16xi32>
    %14 = vector.broadcast %12 : vector<300x1xi32> to vector<300x16xi32>
    %15 = arith.cmpi eq, %13, %14 : vector<300x16xi32>
    %cst_5 = arith.constant 0.000000e+00 : f32
    %16 = vector.broadcast %cst_5 : f32 to vector<300x16xf32>
    %17 = arith.select %15, %3, %16 : vector<300x16xi1>, vector<300x16xf32>
    %cst_6 = arith.constant dense<0.000000e+00> : vector<300xf32>
    %18 = vector.multi_reduction <add>, %17, %cst_6 [1] : vector<300x16xf32> to vector<300xf32>
    %19 = vector.shape_cast %18 : vector<300xf32> to vector<300x1xf32>
    %20 = arith.addf %5, %11 : vector<300x1xf32>
    %21 = arith.subf %20, %19 : vector<300x1xf32>
    %c0_7 = arith.constant 0 : index
    %c0_8 = arith.constant 0 : index
    %22 = vector.load %arg3[%c0_7, %c0_8] : memref<300x1xf32, #tpu.memory_space<vmem>>, vector<300x1xf32>
    %23 = arith.mulf %22, %21 : vector<300x1xf32>
    %cst_9 = arith.constant 1.400000e+00 : f32
    %24 = vector.broadcast %cst_9 : f32 to vector<300x1xf32>
    %25 = arith.subf %24, %23 : vector<300x1xf32>
    %cst_10 = arith.constant 0.000000e+00 : f32
    %26 = vector.broadcast %cst_10 : f32 to vector<300x1xf32>
    %27 = arith.maximumf %25, %26 : vector<300x1xf32>
    %c300_i32 = arith.constant 300 : i32
    %28 = arith.muli %arg0, %c300_i32 : i32
    %29 = tpu.iota {dimensions = array<i32: 0>} : vector<300x1xi32>
    %30 = vector.broadcast %28 : i32 to vector<300x1xi32>
    %31 = arith.addi %30, %29 : vector<300x1xi32>
    %c300_i32_11 = arith.constant 300 : i32
    %32 = vector.broadcast %c300_i32_11 : i32 to vector<300x1xi32>
    %33 = arith.cmpi slt, %31, %32 : vector<300x1xi32>
    %cst_12 = arith.constant 0.000000e+00 : f32
    %34 = vector.broadcast %cst_12 : f32 to vector<300x1xf32>
    %35 = arith.select %33, %27, %34 : vector<300x1xi1>, vector<300x1xf32>
    %c0_13 = arith.constant 0 : index
    %c0_14 = arith.constant 0 : index
    %36 = vector.load %arg5[%c0_13, %c0_14] : memref<1x1xf32, #tpu.memory_space<vmem>>, vector<1x1xf32>
    %37 = vector.shape_cast %35 : vector<300x1xf32> to vector<1x300x1xf32>
    %cst_15 = arith.constant dense<0.000000e+00> : vector<1xf32>
    %38 = vector.multi_reduction <add>, %37, %cst_15 [1, 2] : vector<1x300x1xf32> to vector<1xf32>
    %39 = vector.shape_cast %38 : vector<1xf32> to vector<1x1x1xf32>
    %40 = vector.extract %39[0, 0, 0] : f32 from vector<1x1x1xf32>
    %41 = vector.broadcast %40 : f32 to vector<1x1xf32>
    %42 = arith.addf %36, %41 : vector<1x1xf32>
    %c0_16 = arith.constant 0 : index
    %c0_17 = arith.constant 0 : index
    %43 = vector.load %arg5[%c0_16, %c0_17] : memref<1x1xf32, #tpu.memory_space<vmem>>, vector<1x1xf32>
    tpu.vector_store %arg5[%c0_16, %c0_17], %42 {strides = array<i32>} : memref<1x1xf32, #tpu.memory_space<vmem>>, vector<1x1xf32>,
    %c0_i32_18 = arith.constant 0 : i32
    %44 = arith.cmpi eq, %arg0, %c0_i32_18 : i32
    %45 = arith.extui %44 : i1 to i32
    %c0_i32_19 = arith.constant 0 : i32
    %46 = arith.cmpi ne, %45, %c0_i32_19 : i32
    scf.if %46 {
      %c0_20 = arith.constant 0 : index
      %c0_21 = arith.constant 0 : index
      %47 = vector.load %arg5[%c0_20, %c0_21] : memref<1x1xf32, #tpu.memory_space<vmem>>, vector<1x1xf32>
      %c0_22 = arith.constant 0 : index
      %c0_23 = arith.constant 0 : index
      %48 = vector.load %arg4[%c0_22, %c0_23] : memref<1x1xf32, #tpu.memory_space<vmem>>, vector<1x1xf32>
      tpu.vector_store %arg4[%c0_22, %c0_23], %47 {strides = array<i32>} : memref<1x1xf32, #tpu.memory_space<vmem>>, vector<1x1xf32>,
    } else {
    }
    return
  }
  func.func @transform_0(%arg0: i32) -> (i32, i32) {
    %c0_i32 = arith.constant 0 : i32
    %c0_i32_0 = arith.constant 0 : i32
    return %arg0, %c0_i32 : i32, i32
  }
  func.func @transform_1(%arg0: i32) -> (i32, i32) {
    %c0_i32 = arith.constant 0 : i32
    %c0_i32_0 = arith.constant 0 : i32
    return %arg0, %c0_i32 : i32, i32
  }
  func.func @transform_2(%arg0: i32) -> (i32, i32) {
    %c0_i32 = arith.constant 0 : i32
    %c0_i32_0 = arith.constant 0 : i32
    return %arg0, %c0_i32 : i32, i32
  }
  func.func @transform_3(%arg0: i32) -> (i32, i32) {
    %c0_i32 = arith.constant 0 : i32
    %c0_i32_0 = arith.constant 0 : i32
    %c0_i32_1 = arith.constant 0 : i32
    return %c0_i32, %c0_i32_0 : i32, i32
  }
}

</mosaic_0001>

<llo_original>
// kernel: tpu_custom_call.1
$region0: #{tpu_custom_call.1}
  #allocation0 [shape = 'u32[]', space=smem, size = 0x4, offset = 0x4, fixed_abs, tag = 'smem constant byte address 0x4 - core index']
  #allocation1 [shape = 'u32[144,128]{1,0:T(1,128)}', space=vmem, size = 0x12000, scoped, tag = 'internal scratch']
  #allocation2 [shape = 'f32[1,1]{1,0:T(1,128)}', space=vmem, size = 0x200, scoped, tag = 'scratch operand']
  %s0 = inlined_call_operand.vmem [shape: f32[300,16], index: 0, kind: input, shape index: {}]
  %s1 = inlined_call_operand.vmem [shape: s32[300,1], index: 1, kind: input, shape index: {}]
  %s2 = inlined_call_operand.vmem [shape: f32[300,1], index: 2, kind: input, shape index: {}]
  %s3 = inlined_call_operand.hbm [shape: f32[1,1], index: 3, kind: output, shape index: {}]
  %s4 = sld [smem:[#allocation0]]
  $region30: #{tpu_custom_call.1} parent=0
    _
  %s6 = ssub.s32 1, %s4
  %s7 = scalar_select 0, %s6, %s4
  $region1: #{tpu_custom_call.1} parent=0
    #allocation3 [shape = 'u8[512]{0}', space=vmem, size = 0x400, scoped, tag = 'output window, operand 0, single buffered']
    #allocation4 [shape = 's32[1]{0}', space=sflag, size = 0x4, scoped, tag = 'scoped memory for tpu_custom_call.1']
    %8 = vsyncpa [#allocation4], 0
    // Predicated region
    $region2: #{tpu_custom_call.1} parent=1 // pred_check
      _
    $region3: #{tpu_custom_call.1} parent=1 // pred_check_branch
      %10 = sbr.rel (0) target = $region5
    $region4: #{tpu_custom_call.1} parent=1 // pred_region
      _
    $region5: #{tpu_custom_call.1} parent=1 // pred_fallthru
      _
    // Predicated region
    $region6: #{tpu_custom_call.1} parent=1 // pred_check
      _
    $region7: #{tpu_custom_call.1} parent=1 // pred_check_branch
      %12 = sbr.rel (0) target = $region9
    $region8: #{tpu_custom_call.1} parent=1 // pred_region
      _
    $region9: #{tpu_custom_call.1} parent=1 // pred_fallthru
      _
    // Predicated region
    $region10: #{tpu_custom_call.1} parent=1 // pred_check
      _
    $region11: #{tpu_custom_call.1} parent=1 // pred_check_branch
      %14 = sbr.rel (0) target = $region13
    $region12: #{tpu_custom_call.1} parent=1 // pred_region
      _
    $region13: #{tpu_custom_call.1} parent=1 // pred_fallthru
      _
    %p15 = scmp.eq.s32.totalorder 0, 0
    // Predicated region
    $region14: #{tpu_custom_call.1} parent=1 // pred_check
      %p16 = pneg %p15
    $region15: #{tpu_custom_call.1} parent=1 // pred_check_branch
      %18 = sbr.rel (%p16) target = $region17
    $region16: #{tpu_custom_call.1} parent=1 // pred_region
      %vm19 = vcmask 0
      %20 = vst.msk [vmem:[#allocation2] sm:$0x1] %vm19, 0.0
    $region17: #{tpu_custom_call.1} parent=1 // pred_fallthru
      _
    %v21 = vld [vmem:[%s0] sm:$0xff]
    %v22 = vld [vmem:[%s0 + $0x8] sm:$0xff]
    %v23 = vld [vmem:[%s0 + $0x10] sm:$0xff]
    %v24 = vld [vmem:[%s0 + $0x18] sm:$0xff]
    %v25 = vld [vmem:[%s0 + $0x20] sm:$0xff]
    %v26 = vld [vmem:[%s0 + $0x28] sm:$0xff]
    %v27 = vld [vmem:[%s0 + $0x30] sm:$0xff]
    %v28 = vld [vmem:[%s0 + $0x38] sm:$0xff]
    %v29 = vld [vmem:[%s0 + $0x40] sm:$0xff]
    %v30 = vld [vmem:[%s0 + $0x48] sm:$0xff]
    %v31 = vld [vmem:[%s0 + $0x50] sm:$0xff]
    %v32 = vld [vmem:[%s0 + $0x58] sm:$0xff]
    %v33 = vld [vmem:[%s0 + $0x60] sm:$0xff]
    %v34 = vld [vmem:[%s0 + $0x68] sm:$0xff]
    %v35 = vld [vmem:[%s0 + $0x70] sm:$0xff]
    %v36 = vld [vmem:[%s0 + $0x78] sm:$0xff]
    %v37 = vld [vmem:[%s0 + $0x80] sm:$0xff]
    %v38 = vld [vmem:[%s0 + $0x88] sm:$0xff]
    %v39 = vld [vmem:[%s0 + $0x90] sm:$0xff]
    %v40 = vld [vmem:[%s0 + $0x98] sm:$0xff]
    %v41 = vld [vmem:[%s0 + $0xa0] sm:$0xff]
    %v42 = vld [vmem:[%s0 + $0xa8] sm:$0xff]
    %v43 = vld [vmem:[%s0 + $0xb0] sm:$0xff]
    %v44 = vld [vmem:[%s0 + $0xb8] sm:$0xff]
    %v45 = vld [vmem:[%s0 + $0xc0] sm:$0xff]
    %v46 = vld [vmem:[%s0 + $0xc8] sm:$0xff]
    %v47 = vld [vmem:[%s0 + $0xd0] sm:$0xff]
    %v48 = vld [vmem:[%s0 + $0xd8] sm:$0xff]
    %v49 = vld [vmem:[%s0 + $0xe0] sm:$0xff]
    %v50 = vld [vmem:[%s0 + $0xe8] sm:$0xff]
    %v51 = vld [vmem:[%s0 + $0xf0] sm:$0xff]
    %v52 = vld [vmem:[%s0 + $0xf8] sm:$0xff]
    %v53 = vld [vmem:[%s0 + $0x100] sm:$0xff]
    %v54 = vld [vmem:[%s0 + $0x108] sm:$0xff]
    %v55 = vld [vmem:[%s0 + $0x110] sm:$0xff]
    %v56 = vld [vmem:[%s0 + $0x118] sm:$0xff]
    %v57 = vld [vmem:[%s0 + $0x120] sm:$0xff]
    %v58 = vld [vmem:[%s0 + $0x128] sm:$0xf]
    %vm59 = vcmask 130048
    %v60 = vsel %vm59, %v21, -inf
    %61 = vmax.xlane.f32.xlu0 %v60
    %v62 = vpop.xlane.xlu0 %61
    %v63 = vsel %vm59, %v22, -inf
    %64 = vmax.xlane.f32.xlu0 %v63
    %v65 = vpop.xlane.xlu0 %64
    %v66 = vsel %vm59, %v23, -inf
    %67 = vmax.xlane.f32.xlu0 %v66
    %v68 = vpop.xlane.xlu0 %67
    %v69 = vsel %vm59, %v24, -inf
    %70 = vmax.xlane.f32.xlu0 %v69
    %v71 = vpop.xlane.xlu0 %70
    %v72 = vsel %vm59, %v25, -inf
    %73 = vmax.xlane.f32.xlu0 %v72
    %v74 = vpop.xlane.xlu0 %73
    %v75 = vsel %vm59, %v26, -inf
    %76 = vmax.xlane.f32.xlu0 %v75
    %v77 = vpop.xlane.xlu0 %76
    %v78 = vsel %vm59, %v27, -inf
    %79 = vmax.xlane.f32.xlu0 %v78
    %v80 = vpop.xlane.xlu0 %79
    %v81 = vsel %vm59, %v28, -inf
    %82 = vmax.xlane.f32.xlu0 %v81
    %v83 = vpop.xlane.xlu0 %82
    %v84 = vsel %vm59, %v29, -inf
    %85 = vmax.xlane.f32.xlu0 %v84
    %v86 = vpop.xlane.xlu0 %85
    %v87 = vsel %vm59, %v30, -inf
    %88 = vmax.xlane.f32.xlu0 %v87
    %v89 = vpop.xlane.xlu0 %88
    %v90 = vsel %vm59, %v31, -inf
    %91 = vmax.xlane.f32.xlu0 %v90
    %v92 = vpop.xlane.xlu0 %91
    %v93 = vsel %vm59, %v32, -inf
    %94 = vmax.xlane.f32.xlu0 %v93
    %v95 = vpop.xlane.xlu0 %94
    %v96 = vsel %vm59, %v33, -inf
    %97 = vmax.xlane.f32.xlu0 %v96
    %v98 = vpop.xlane.xlu0 %97
    %v99 = vsel %vm59, %v34, -inf
    %100 = vmax.xlane.f32.xlu0 %v99
    %v101 = vpop.xlane.xlu0 %100
    %v102 = vsel %vm59, %v35, -inf
    %103 = vmax.xlane.f32.xlu0 %v102
    %v104 = vpop.xlane.xlu0 %103
    %v105 = vsel %vm59, %v36, -inf
    %106 = vmax.xlane.f32.xlu0 %v105
    %v107 = vpop.xlane.xlu0 %106
    %v108 = vsel %vm59, %v37, -inf
    %109 = vmax.xlane.f32.xlu0 %v108
    %v110 = vpop.xlane.xlu0 %109
    %v111 = vsel %vm59, %v38, -inf
    %112 = vmax.xlane.f32.xlu0 %v111
    %v113 = vpop.xlane.xlu0 %112
    %v114 = vsel %vm59, %v39, -inf
    %115 = vmax.xlane.f32.xlu0 %v114
    %v116 = vpop.xlane.xlu0 %115
    %v117 = vsel %vm59, %v40, -inf
    %118 = vmax.xlane.f32.xlu0 %v117
    %v119 = vpop.xlane.xlu0 %118
    %v120 = vsel %vm59, %v41, -inf
    %121 = vmax.xlane.f32.xlu0 %v120
    %v122 = vpop.xlane.xlu0 %121
    %v123 = vsel %vm59, %v42, -inf
    %124 = vmax.xlane.f32.xlu0 %v123
    %v125 = vpop.xlane.xlu0 %124
    %v126 = vsel %vm59, %v43, -inf
    %127 = vmax.xlane.f32.xlu0 %v126
    %v128 = vpop.xlane.xlu0 %127
    %v129 = vsel %vm59, %v44, -inf
    %130 = vmax.xlane.f32.xlu0 %v129
    %v131 = vpop.xlane.xlu0 %130
    %v132 = vsel %vm59, %v45, -inf
    %133 = vmax.xlane.f32.xlu0 %v132
    %v134 = vpop.xlane.xlu0 %133
    %v135 = vsel %vm59, %v46, -inf
    %136 = vmax.xlane.f32.xlu0 %v135
    %v137 = vpop.xlane.xlu0 %136
    %v138 = vsel %vm59, %v47, -inf
    %139 = vmax.xlane.f32.xlu0 %v138
    %v140 = vpop.xlane.xlu0 %139
    %v141 = vsel %vm59, %v48, -inf
    %142 = vmax.xlane.f32.xlu0 %v141
    %v143 = vpop.xlane.xlu0 %142
    %v144 = vsel %vm59, %v49, -inf
    %145 = vmax.xlane.f32.xlu0 %v144
    %v146 = vpop.xlane.xlu0 %145
    %v147 = vsel %vm59, %v50, -inf
    %148 = vmax.xlane.f32.xlu0 %v147
    %v149 = vpop.xlane.xlu0 %148
    %v150 = vsel %vm59, %v51, -inf
    %151 = vmax.xlane.f32.xlu0 %v150
    %v152 = vpop.xlane.xlu0 %151
    %v153 = vsel %vm59, %v52, -inf
    %154 = vmax.xlane.f32.xlu0 %v153
    %v155 = vpop.xlane.xlu0 %154
    %v156 = vsel %vm59, %v53, -inf
    %157 = vmax.xlane.f32.xlu0 %v156
    %v158 = vpop.xlane.xlu0 %157
    %v159 = vsel %vm59, %v54, -inf
    %160 = vmax.xlane.f32.xlu0 %v159
    %v161 = vpop.xlane.xlu0 %160
    %v162 = vsel %vm59, %v55, -inf
    %163 = vmax.xlane.f32.xlu0 %v162
    %v164 = vpop.xlane.xlu0 %163
    %v165 = vsel %vm59, %v56, -inf
    %166 = vmax.xlane.f32.xlu0 %v165
    %v167 = vpop.xlane.xlu0 %166
    %v168 = vsel %vm59, %v57, -inf
    %169 = vmax.xlane.f32.xlu0 %v168
    %v170 = vpop.xlane.xlu0 %169
    %vm171 = vcmask 125952
    %v172 = vsel %vm171, %v58, -inf
    %173 = vmax.xlane.f32.xlu0 %v172
    %v174 = vpop.xlane.xlu0 %173
    %v175 = vsub.f32 %v21, %v62
    %v176 = vsub.f32 %v22, %v65
    %v177 = vsub.f32 %v23, %v68
    %v178 = vsub.f32 %v24, %v71
    %v179 = vsub.f32 %v25, %v74
    %v180 = vsub.f32 %v26, %v77
    %v181 = vsub.f32 %v27, %v80
    %v182 = vsub.f32 %v28, %v83
    %v183 = vsub.f32 %v29, %v86
    %v184 = vsub.f32 %v30, %v89
    %v185 = vsub.f32 %v31, %v92
    %v186 = vsub.f32 %v32, %v95
    %v187 = vsub.f32 %v33, %v98
    %v188 = vsub.f32 %v34, %v101
    %v189 = vsub.f32 %v35, %v104
    %v190 = vsub.f32 %v36, %v107
    %v191 = vsub.f32 %v37, %v110
    %v192 = vsub.f32 %v38, %v113
    %v193 = vsub.f32 %v39, %v116
    %v194 = vsub.f32 %v40, %v119
    %v195 = vsub.f32 %v41, %v122
    %v196 = vsub.f32 %v42, %v125
    %v197 = vsub.f32 %v43, %v128
    %v198 = vsub.f32 %v44, %v131
    %v199 = vsub.f32 %v45, %v134
    %v200 = vsub.f32 %v46, %v137
    %v201 = vsub.f32 %v47, %v140
    %v202 = vsub.f32 %v48, %v143
    %v203 = vsub.f32 %v49, %v146
    %v204 = vsub.f32 %v50, %v149
    %v205 = vsub.f32 %v51, %v152
    %v206 = vsub.f32 %v52, %v155
    %v207 = vsub.f32 %v53, %v158
    %v208 = vsub.f32 %v54, %v161
    %v209 = vsub.f32 %v55, %v164
    %v210 = vsub.f32 %v56, %v167
    %v211 = vsub.f32 %v57, %v170
    %v212 = vsub.f32 %v58, %v174
    %v213 = vmul.f32 %v175, 1.442695
    %v214 = vpow.pop %v213
    %v215 = vmul.f32 %v176, 1.442695
    %v216 = vpow.pop %v215
    %v217 = vmul.f32 %v177, 1.442695
    %v218 = vpow.pop %v217
    %v219 = vmul.f32 %v178, 1.442695
    %v220 = vpow.pop %v219
    %v221 = vmul.f32 %v179, 1.442695
    %v222 = vpow.pop %v221
    %v223 = vmul.f32 %v180, 1.442695
    %v224 = vpow.pop %v223
    %v225 = vmul.f32 %v181, 1.442695
    %v226 = vpow.pop %v225
    %v227 = vmul.f32 %v182, 1.442695
    %v228 = vpow.pop %v227
    %v229 = vmul.f32 %v183, 1.442695
    %v230 = vpow.pop %v229
    %v231 = vmul.f32 %v184, 1.442695
    %v232 = vpow.pop %v231
    %v233 = vmul.f32 %v185, 1.442695
    %v234 = vpow.pop %v233
    %v235 = vmul.f32 %v186, 1.442695
    %v236 = vpow.pop %v235
    %v237 = vmul.f32 %v187, 1.442695
    %v238 = vpow.pop %v237
    %v239 = vmul.f32 %v188, 1.442695
    %v240 = vpow.pop %v239
    %v241 = vmul.f32 %v189, 1.442695
    %v242 = vpow.pop %v241
    %v243 = vmul.f32 %v190, 1.442695
    %v244 = vpow.pop %v243
    %v245 = vmul.f32 %v191, 1.442695
    %v246 = vpow.pop %v245
    %v247 = vmul.f32 %v192, 1.442695
    %v248 = vpow.pop %v247
    %v249 = vmul.f32 %v193, 1.442695
    %v250 = vpow.pop %v249
    %v251 = vmul.f32 %v194, 1.442695
    %v252 = vpow.pop %v251
    %v253 = vmul.f32 %v195, 1.442695
    %v254 = vpow.pop %v253
    %v255 = vmul.f32 %v196, 1.442695
    %v256 = vpow.pop %v255
    %v257 = vmul.f32 %v197, 1.442695
    %v258 = vpow.pop %v257
    %v259 = vmul.f32 %v198, 1.442695
    %v260 = vpow.pop %v259
    %v261 = vmul.f32 %v199, 1.442695
    %v262 = vpow.pop %v261
    %v263 = vmul.f32 %v200, 1.442695
    %v264 = vpow.pop %v263
    %v265 = vmul.f32 %v201, 1.442695
    %v266 = vpow.pop %v265
    %v267 = vmul.f32 %v202, 1.442695
    %v268 = vpow.pop %v267
    %v269 = vmul.f32 %v203, 1.442695
    %v270 = vpow.pop %v269
    %v271 = vmul.f32 %v204, 1.442695
    %v272 = vpow.pop %v271
    %v273 = vmul.f32 %v205, 1.442695
    %v274 = vpow.pop %v273
    %v275 = vmul.f32 %v206, 1.442695
    %v276 = vpow.pop %v275
    %v277 = vmul.f32 %v207, 1.442695
    %v278 = vpow.pop %v277
    %v279 = vmul.f32 %v208, 1.442695
    %v280 = vpow.pop %v279
    %v281 = vmul.f32 %v209, 1.442695
    %v282 = vpow.pop %v281
    %v283 = vmul.f32 %v210, 1.442695
    %v284 = vpow.pop %v283
    %v285 = vmul.f32 %v211, 1.442695
    %v286 = vpow.pop %v285
    %v287 = vmul.f32 %v212, 1.442695
    %v288 = vpow.pop %v287
    %v289 = vsel %vm59, %v214, 0.0
    %290 = vadd.xlane.f32.xlu0 %v289
    %v291 = vpop.xlane.xlu0 %290
    %v292 = vsel %vm59, %v216, 0.0
    %293 = vadd.xlane.f32.xlu0 %v292
    %v294 = vpop.xlane.xlu0 %293
    %v295 = vsel %vm59, %v218, 0.0
    %296 = vadd.xlane.f32.xlu0 %v295
    %v297 = vpop.xlane.xlu0 %296
    %v298 = vsel %vm59, %v220, 0.0
    %299 = vadd.xlane.f32.xlu0 %v298
    %v300 = vpop.xlane.xlu0 %299
    %v301 = vsel %vm59, %v222, 0.0
    %302 = vadd.xlane.f32.xlu0 %v301
    %v303 = vpop.xlane.xlu0 %302
    %v304 = vsel %vm59, %v224, 0.0
    %305 = vadd.xlane.f32.xlu0 %v304
    %v306 = vpop.xlane.xlu0 %305
    %v307 = vsel %vm59, %v226, 0.0
    %308 = vadd.xlane.f32.xlu0 %v307
    %v309 = vpop.xlane.xlu0 %308
    %v310 = vsel %vm59, %v228, 0.0
    %311 = vadd.xlane.f32.xlu0 %v310
    %v312 = vpop.xlane.xlu0 %311
    %v313 = vsel %vm59, %v230, 0.0
    %314 = vadd.xlane.f32.xlu0 %v313
    %v315 = vpop.xlane.xlu0 %314
    %v316 = vsel %vm59, %v232, 0.0
    %317 = vadd.xlane.f32.xlu0 %v316
    %v318 = vpop.xlane.xlu0 %317
    %v319 = vsel %vm59, %v234, 0.0
    %320 = vadd.xlane.f32.xlu0 %v319
    %v321 = vpop.xlane.xlu0 %320
    %v322 = vsel %vm59, %v236, 0.0
    %323 = vadd.xlane.f32.xlu0 %v322
    %v324 = vpop.xlane.xlu0 %323
    %v325 = vsel %vm59, %v238, 0.0
    %326 = vadd.xlane.f32.xlu0 %v325
    %v327 = vpop.xlane.xlu0 %326
    %v328 = vsel %vm59, %v240, 0.0
    %329 = vadd.xlane.f32.xlu0 %v328
    %v330 = vpop.xlane.xlu0 %329
    %v331 = vsel %vm59, %v242, 0.0
    %332 = vadd.xlane.f32.xlu0 %v331
    %v333 = vpop.xlane.xlu0 %332
    %v334 = vsel %vm59, %v244, 0.0
    %335 = vadd.xlane.f32.xlu0 %v334
    %v336 = vpop.xlane.xlu0 %335
    %v337 = vsel %vm59, %v246, 0.0
    %338 = vadd.xlane.f32.xlu0 %v337
    %v339 = vpop.xlane.xlu0 %338
    %v340 = vsel %vm59, %v248, 0.0
    %341 = vadd.xlane.f32.xlu0 %v340
    %v342 = vpop.xlane.xlu0 %341
    %v343 = vsel %vm59, %v250, 0.0
    %344 = vadd.xlane.f32.xlu0 %v343
    %v345 = vpop.xlane.xlu0 %344
    %v346 = vsel %vm59, %v252, 0.0
    %347 = vadd.xlane.f32.xlu0 %v346
    %v348 = vpop.xlane.xlu0 %347
    %v349 = vsel %vm59, %v254, 0.0
    %350 = vadd.xlane.f32.xlu0 %v349
    %v351 = vpop.xlane.xlu0 %350
    %v352 = vsel %vm59, %v256, 0.0
    %353 = vadd.xlane.f32.xlu0 %v352
    %v354 = vpop.xlane.xlu0 %353
    %v355 = vsel %vm59, %v258, 0.0
    %356 = vadd.xlane.f32.xlu0 %v355
    %v357 = vpop.xlane.xlu0 %356
    %v358 = vsel %vm59, %v260, 0.0
    %359 = vadd.xlane.f32.xlu0 %v358
    %v360 = vpop.xlane.xlu0 %359
    %v361 = vsel %vm59, %v262, 0.0
    %362 = vadd.xlane.f32.xlu0 %v361
    %v363 = vpop.xlane.xlu0 %362
    %v364 = vsel %vm59, %v264, 0.0
    %365 = vadd.xlane.f32.xlu0 %v364
    %v366 = vpop.xlane.xlu0 %365
    %v367 = vsel %vm59, %v266, 0.0
    %368 = vadd.xlane.f32.xlu0 %v367
    %v369 = vpop.xlane.xlu0 %368
    %v370 = vsel %vm59, %v268, 0.0
    %371 = vadd.xlane.f32.xlu0 %v370
    %v372 = vpop.xlane.xlu0 %371
    %v373 = vsel %vm59, %v270, 0.0
    %374 = vadd.xlane.f32.xlu0 %v373
    %v375 = vpop.xlane.xlu0 %374
    %v376 = vsel %vm59, %v272, 0.0
    %377 = vadd.xlane.f32.xlu0 %v376
    %v378 = vpop.xlane.xlu0 %377
    %v379 = vsel %vm59, %v274, 0.0
    %380 = vadd.xlane.f32.xlu0 %v379
    %v381 = vpop.xlane.xlu0 %380
    %v382 = vsel %vm59, %v276, 0.0
    %383 = vadd.xlane.f32.xlu0 %v382
    %v384 = vpop.xlane.xlu0 %383
    %v385 = vsel %vm59, %v278, 0.0
    %386 = vadd.xlane.f32.xlu0 %v385
    %v387 = vpop.xlane.xlu0 %386
    %v388 = vsel %vm59, %v280, 0.0
    %389 = vadd.xlane.f32.xlu0 %v388
    %v390 = vpop.xlane.xlu0 %389
    %v391 = vsel %vm59, %v282, 0.0
    %392 = vadd.xlane.f32.xlu0 %v391
    %v393 = vpop.xlane.xlu0 %392
    %v394 = vsel %vm59, %v284, 0.0
    %395 = vadd.xlane.f32.xlu0 %v394
    %v396 = vpop.xlane.xlu0 %395
    %v397 = vsel %vm59, %v286, 0.0
    %398 = vadd.xlane.f32.xlu0 %v397
    %v399 = vpop.xlane.xlu0 %398
    %v400 = vsel %vm171, %v288, 0.0
    %401 = vadd.xlane.f32.xlu0 %v400
    %v402 = vpop.xlane.xlu0 %401
    %v403 = vlog2.pop %v291
    %v404 = vmul.f32 %v403, 0.6931472
    %v405 = vlog2.pop %v294
    %v406 = vmul.f32 %v405, 0.6931472
    %v407 = vlog2.pop %v297
    %v408 = vmul.f32 %v407, 0.6931472
    %v409 = vlog2.pop %v300
    %v410 = vmul.f32 %v409, 0.6931472
    %v411 = vlog2.pop %v303
    %v412 = vmul.f32 %v411, 0.6931472
    %v413 = vlog2.pop %v306
    %v414 = vmul.f32 %v413, 0.6931472
    %v415 = vlog2.pop %v309
    %v416 = vmul.f32 %v415, 0.6931472
    %v417 = vlog2.pop %v312
    %v418 = vmul.f32 %v417, 0.6931472
    %v419 = vlog2.pop %v315
    %v420 = vmul.f32 %v419, 0.6931472
    %v421 = vlog2.pop %v318
    %v422 = vmul.f32 %v421, 0.6931472
    %v423 = vlog2.pop %v321
    %v424 = vmul.f32 %v423, 0.6931472
    %v425 = vlog2.pop %v324
    %v426 = vmul.f32 %v425, 0.6931472
    %v427 = vlog2.pop %v327
    %v428 = vmul.f32 %v427, 0.6931472
    %v429 = vlog2.pop %v330
    %v430 = vmul.f32 %v429, 0.6931472
    %v431 = vlog2.pop %v333
    %v432 = vmul.f32 %v431, 0.6931472
    %v433 = vlog2.pop %v336
    %v434 = vmul.f32 %v433, 0.6931472
    %v435 = vlog2.pop %v339
    %v436 = vmul.f32 %v435, 0.6931472
    %v437 = vlog2.pop %v342
    %v438 = vmul.f32 %v437, 0.6931472
    %v439 = vlog2.pop %v345
    %v440 = vmul.f32 %v439, 0.6931472
    %v441 = vlog2.pop %v348
    %v442 = vmul.f32 %v441, 0.6931472
    %v443 = vlog2.pop %v351
    %v444 = vmul.f32 %v443, 0.6931472
    %v445 = vlog2.pop %v354
    %v446 = vmul.f32 %v445, 0.6931472
    %v447 = vlog2.pop %v357
    %v448 = vmul.f32 %v447, 0.6931472
    %v449 = vlog2.pop %v360
    %v450 = vmul.f32 %v449, 0.6931472
    %v451 = vlog2.pop %v363
    %v452 = vmul.f32 %v451, 0.6931472
    %v453 = vlog2.pop %v366
    %v454 = vmul.f32 %v453, 0.6931472
    %v455 = vlog2.pop %v369
    %v456 = vmul.f32 %v455, 0.6931472
    %v457 = vlog2.pop %v372
    %v458 = vmul.f32 %v457, 0.6931472
    %v459 = vlog2.pop %v375
    %v460 = vmul.f32 %v459, 0.6931472
    %v461 = vlog2.pop %v378
    %v462 = vmul.f32 %v461, 0.6931472
    %v463 = vlog2.pop %v381
    %v464 = vmul.f32 %v463, 0.6931472
    %v465 = vlog2.pop %v384
    %v466 = vmul.f32 %v465, 0.6931472
    %v467 = vlog2.pop %v387
    %v468 = vmul.f32 %v467, 0.6931472
    %v469 = vlog2.pop %v390
    %v470 = vmul.f32 %v469, 0.6931472
    %v471 = vlog2.pop %v393
    %v472 = vmul.f32 %v471, 0.6931472
    %v473 = vlog2.pop %v396
    %v474 = vmul.f32 %v473, 0.6931472
    %v475 = vlog2.pop %v399
    %v476 = vmul.f32 %v475, 0.6931472
    %v477 = vlog2.pop %v402
    %v478 = vmul.f32 %v477, 0.6931472
    %v479 = vld [vmem:[%s1] sm:$0xff]
    %v480 = vld [vmem:[%s1 + $0x8] sm:$0xff]
    %v481 = vld [vmem:[%s1 + $0x10] sm:$0xff]
    %v482 = vld [vmem:[%s1 + $0x18] sm:$0xff]
    %v483 = vld [vmem:[%s1 + $0x20] sm:$0xff]
    %v484 = vld [vmem:[%s1 + $0x28] sm:$0xff]
    %v485 = vld [vmem:[%s1 + $0x30] sm:$0xff]
    %v486 = vld [vmem:[%s1 + $0x38] sm:$0xff]
    %v487 = vld [vmem:[%s1 + $0x40] sm:$0xff]
    %v488 = vld [vmem:[%s1 + $0x48] sm:$0xff]
    %v489 = vld [vmem:[%s1 + $0x50] sm:$0xff]
    %v490 = vld [vmem:[%s1 + $0x58] sm:$0xff]
    %v491 = vld [vmem:[%s1 + $0x60] sm:$0xff]
    %v492 = vld [vmem:[%s1 + $0x68] sm:$0xff]
    %v493 = vld [vmem:[%s1 + $0x70] sm:$0xff]
    %v494 = vld [vmem:[%s1 + $0x78] sm:$0xff]
    %v495 = vld [vmem:[%s1 + $0x80] sm:$0xff]
    %v496 = vld [vmem:[%s1 + $0x88] sm:$0xff]
    %v497 = vld [vmem:[%s1 + $0x90] sm:$0xff]
    %v498 = vld [vmem:[%s1 + $0x98] sm:$0xff]
    %v499 = vld [vmem:[%s1 + $0xa0] sm:$0xff]
    %v500 = vld [vmem:[%s1 + $0xa8] sm:$0xff]
    %v501 = vld [vmem:[%s1 + $0xb0] sm:$0xff]
    %v502 = vld [vmem:[%s1 + $0xb8] sm:$0xff]
    %v503 = vld [vmem:[%s1 + $0xc0] sm:$0xff]
    %v504 = vld [vmem:[%s1 + $0xc8] sm:$0xff]
    %v505 = vld [vmem:[%s1 + $0xd0] sm:$0xff]
    %v506 = vld [vmem:[%s1 + $0xd8] sm:$0xff]
    %v507 = vld [vmem:[%s1 + $0xe0] sm:$0xff]
    %v508 = vld [vmem:[%s1 + $0xe8] sm:$0xff]
    %v509 = vld [vmem:[%s1 + $0xf0] sm:$0xff]
    %v510 = vld [vmem:[%s1 + $0xf8] sm:$0xff]
    %v511 = vld [vmem:[%s1 + $0x100] sm:$0xff]
    %v512 = vld [vmem:[%s1 + $0x108] sm:$0xff]
    %v513 = vld [vmem:[%s1 + $0x110] sm:$0xff]
    %v514 = vld [vmem:[%s1 + $0x118] sm:$0xff]
    %v515 = vld [vmem:[%s1 + $0x120] sm:$0xff]
    %v516 = vld [vmem:[%s1 + $0x128] sm:$0xf]
    %v517 = vlaneseq
    %v518 = vand.u32 %v517, 127
    %519 = vset.pattern.permute.xlu0 0
    %520 = vperm.xlu0 %519, %v479
    %v521 = vpop.permute.xlu0 %520
    %522 = vset.pattern.permute.xlu0 0
    %523 = vperm.xlu0 %522, %v480
    %v524 = vpop.permute.xlu0 %523
    %525 = vset.pattern.permute.xlu0 0
    %526 = vperm.xlu0 %525, %v481
    %v527 = vpop.permute.xlu0 %526
    %528 = vset.pattern.permute.xlu0 0
    %529 = vperm.xlu0 %528, %v482
    %v530 = vpop.permute.xlu0 %529
    %531 = vset.pattern.permute.xlu0 0
    %532 = vperm.xlu0 %531, %v483
    %v533 = vpop.permute.xlu0 %532
    %534 = vset.pattern.permute.xlu0 0
    %535 = vperm.xlu0 %534, %v484
    %v536 = vpop.permute.xlu0 %535
    %537 = vset.pattern.permute.xlu0 0
    %538 = vperm.xlu0 %537, %v485
    %v539 = vpop.permute.xlu0 %538
    %540 = vset.pattern.permute.xlu0 0
    %541 = vperm.xlu0 %540, %v486
    %v542 = vpop.permute.xlu0 %541
    %543 = vset.pattern.permute.xlu0 0
    %544 = vperm.xlu0 %543, %v487
    %v545 = vpop.permute.xlu0 %544
    %546 = vset.pattern.permute.xlu0 0
    %547 = vperm.xlu0 %546, %v488
    %v548 = vpop.permute.xlu0 %547
    %549 = vset.pattern.permute.xlu0 0
    %550 = vperm.xlu0 %549, %v489
    %v551 = vpop.permute.xlu0 %550
    %552 = vset.pattern.permute.xlu0 0
    %553 = vperm.xlu0 %552, %v490
    %v554 = vpop.permute.xlu0 %553
    %555 = vset.pattern.permute.xlu0 0
    %556 = vperm.xlu0 %555, %v491
    %v557 = vpop.permute.xlu0 %556
    %558 = vset.pattern.permute.xlu0 0
    %559 = vperm.xlu0 %558, %v492
    %v560 = vpop.permute.xlu0 %559
    %561 = vset.pattern.permute.xlu0 0
    %562 = vperm.xlu0 %561, %v493
    %v563 = vpop.permute.xlu0 %562
    %564 = vset.pattern.permute.xlu0 0
    %565 = vperm.xlu0 %564, %v494
    %v566 = vpop.permute.xlu0 %565
    %567 = vset.pattern.permute.xlu0 0
    %568 = vperm.xlu0 %567, %v495
    %v569 = vpop.permute.xlu0 %568
    %570 = vset.pattern.permute.xlu0 0
    %571 = vperm.xlu0 %570, %v496
    %v572 = vpop.permute.xlu0 %571
    %573 = vset.pattern.permute.xlu0 0
    %574 = vperm.xlu0 %573, %v497
    %v575 = vpop.permute.xlu0 %574
    %576 = vset.pattern.permute.xlu0 0
    %577 = vperm.xlu0 %576, %v498
    %v578 = vpop.permute.xlu0 %577
    %579 = vset.pattern.permute.xlu0 0
    %580 = vperm.xlu0 %579, %v499
    %v581 = vpop.permute.xlu0 %580
    %582 = vset.pattern.permute.xlu0 0
    %583 = vperm.xlu0 %582, %v500
    %v584 = vpop.permute.xlu0 %583
    %585 = vset.pattern.permute.xlu0 0
    %586 = vperm.xlu0 %585, %v501
    %v587 = vpop.permute.xlu0 %586
    %588 = vset.pattern.permute.xlu0 0
    %589 = vperm.xlu0 %588, %v502
    %v590 = vpop.permute.xlu0 %589
    %591 = vset.pattern.permute.xlu0 0
    %592 = vperm.xlu0 %591, %v503
    %v593 = vpop.permute.xlu0 %592
    %594 = vset.pattern.permute.xlu0 0
    %595 = vperm.xlu0 %594, %v504
    %v596 = vpop.permute.xlu0 %595
    %597 = vset.pattern.permute.xlu0 0
    %598 = vperm.xlu0 %597, %v505
    %v599 = vpop.permute.xlu0 %598
    %600 = vset.pattern.permute.xlu0 0
    %601 = vperm.xlu0 %600, %v506
    %v602 = vpop.permute.xlu0 %601
    %603 = vset.pattern.permute.xlu0 0
    %604 = vperm.xlu0 %603, %v507
    %v605 = vpop.permute.xlu0 %604
    %606 = vset.pattern.permute.xlu0 0
    %607 = vperm.xlu0 %606, %v508
    %v608 = vpop.permute.xlu0 %607
    %609 = vset.pattern.permute.xlu0 0
    %610 = vperm.xlu0 %609, %v509
    %v611 = vpop.permute.xlu0 %610
    %612 = vset.pattern.permute.xlu0 0
    %613 = vperm.xlu0 %612, %v510
    %v614 = vpop.permute.xlu0 %613
    %615 = vset.pattern.permute.xlu0 0
    %616 = vperm.xlu0 %615, %v511
    %v617 = vpop.permute.xlu0 %616
    %618 = vset.pattern.permute.xlu0 0
    %619 = vperm.xlu0 %618, %v512
    %v620 = vpop.permute.xlu0 %619
    %621 = vset.pattern.permute.xlu0 0
    %622 = vperm.xlu0 %621, %v513
    %v623 = vpop.permute.xlu0 %622
    %624 = vset.pattern.permute.xlu0 0
    %625 = vperm.xlu0 %624, %v514
    %v626 = vpop.permute.xlu0 %625
    %627 = vset.pattern.permute.xlu0 0
    %628 = vperm.xlu0 %627, %v515
    %v629 = vpop.permute.xlu0 %628
    %630 = vset.pattern.permute.xlu0 0
    %631 = vperm.xlu0 %630, %v516
    %v632 = vpop.permute.xlu0 %631
    %vm633 = vcmp.eq.s32.totalorder %v518, %v521
    %vm634 = vcmp.eq.s32.totalorder %v518, %v524
    %vm635 = vcmp.eq.s32.totalorder %v518, %v527
    %vm636 = vcmp.eq.s32.totalorder %v518, %v530
    %vm637 = vcmp.eq.s32.totalorder %v518, %v533
    %vm638 = vcmp.eq.s32.totalorder %v518, %v536
    %vm639 = vcmp.eq.s32.totalorder %v518, %v539
    %vm640 = vcmp.eq.s32.totalorder %v518, %v542
    %vm641 = vcmp.eq.s32.totalorder %v518, %v545
    %vm642 = vcmp.eq.s32.totalorder %v518, %v548
    %vm643 = vcmp.eq.s32.totalorder %v518, %v551
    %vm644 = vcmp.eq.s32.totalorder %v518, %v554
    %vm645 = vcmp.eq.s32.totalorder %v518, %v557
    %vm646 = vcmp.eq.s32.totalorder %v518, %v560
    %vm647 = vcmp.eq.s32.totalorder %v518, %v563
    %vm648 = vcmp.eq.s32.totalorder %v518, %v566
    %vm649 = vcmp.eq.s32.totalorder %v518, %v569
    %vm650 = vcmp.eq.s32.totalorder %v518, %v572
    %vm651 = vcmp.eq.s32.totalorder %v518, %v575
    %vm652 = vcmp.eq.s32.totalorder %v518, %v578
    %vm653 = vcmp.eq.s32.totalorder %v518, %v581
    %vm654 = vcmp.eq.s32.totalorder %v518, %v584
    %vm655 = vcmp.eq.s32.totalorder %v518, %v587
    %vm656 = vcmp.eq.s32.totalorder %v518, %v590
    %vm657 = vcmp.eq.s32.totalorder %v518, %v593
    %vm658 = vcmp.eq.s32.totalorder %v518, %v596
    %vm659 = vcmp.eq.s32.totalorder %v518, %v599
    %vm660 = vcmp.eq.s32.totalorder %v518, %v602
    %vm661 = vcmp.eq.s32.totalorder %v518, %v605
    %vm662 = vcmp.eq.s32.totalorder %v518, %v608
    %vm663 = vcmp.eq.s32.totalorder %v518, %v611
    %vm664 = vcmp.eq.s32.totalorder %v518, %v614
    %vm665 = vcmp.eq.s32.totalorder %v518, %v617
    %vm666 = vcmp.eq.s32.totalorder %v518, %v620
    %vm667 = vcmp.eq.s32.totalorder %v518, %v623
    %vm668 = vcmp.eq.s32.totalorder %v518, %v626
    %vm669 = vcmp.eq.s32.totalorder %v518, %v629
    %vm670 = vcmp.eq.s32.totalorder %v518, %v632
    %v671 = vsel %vm633, %v21, 0.0
    %v672 = vsel %vm634, %v22, 0.0
    %v673 = vsel %vm635, %v23, 0.0
    %v674 = vsel %vm636, %v24, 0.0
    %v675 = vsel %vm637, %v25, 0.0
    %v676 = vsel %vm638, %v26, 0.0
    %v677 = vsel %vm639, %v27, 0.0
    %v678 = vsel %vm640, %v28, 0.0
    %v679 = vsel %vm641, %v29, 0.0
    %v680 = vsel %vm642, %v30, 0.0
    %v681 = vsel %vm643, %v31, 0.0
    %v682 = vsel %vm644, %v32, 0.0
    %v683 = vsel %vm645, %v33, 0.0
    %v684 = vsel %vm646, %v34, 0.0
    %v685 = vsel %vm647, %v35, 0.0
    %v686 = vsel %vm648, %v36, 0.0
    %v687 = vsel %vm649, %v37, 0.0
    %v688 = vsel %vm650, %v38, 0.0
    %v689 = vsel %vm651, %v39, 0.0
    %v690 = vsel %vm652, %v40, 0.0
    %v691 = vsel %vm653, %v41, 0.0
    %v692 = vsel %vm654, %v42, 0.0
    %v693 = vsel %vm655, %v43, 0.0
    %v694 = vsel %vm656, %v44, 0.0
    %v695 = vsel %vm657, %v45, 0.0
    %v696 = vsel %vm658, %v46, 0.0
    %v697 = vsel %vm659, %v47, 0.0
    %v698 = vsel %vm660, %v48, 0.0
    %v699 = vsel %vm661, %v49, 0.0
    %v700 = vsel %vm662, %v50, 0.0
    %v701 = vsel %vm663, %v51, 0.0
    %v702 = vsel %vm664, %v52, 0.0
    %v703 = vsel %vm665, %v53, 0.0
    %v704 = vsel %vm666, %v54, 0.0
    %v705 = vsel %vm667, %v55, 0.0
    %v706 = vsel %vm668, %v56, 0.0
    %v707 = vsel %vm669, %v57, 0.0
    %v708 = vsel %vm670, %v58, 0.0
    %v709 = vsel %vm59, %v671, 0.0
    %710 = vadd.xlane.f32.xlu0 %v709
    %v711 = vpop.xlane.xlu0 %710
    %v712 = vsel %vm59, %v672, 0.0
    %713 = vadd.xlane.f32.xlu0 %v712
    %v714 = vpop.xlane.xlu0 %713
    %v715 = vsel %vm59, %v673, 0.0
    %716 = vadd.xlane.f32.xlu0 %v715
    %v717 = vpop.xlane.xlu0 %716
    %v718 = vsel %vm59, %v674, 0.0
    %719 = vadd.xlane.f32.xlu0 %v718
    %v720 = vpop.xlane.xlu0 %719
    %v721 = vsel %vm59, %v675, 0.0
    %722 = vadd.xlane.f32.xlu0 %v721
    %v723 = vpop.xlane.xlu0 %722
    %v724 = vsel %vm59, %v676, 0.0
    %725 = vadd.xlane.f32.xlu0 %v724
    %v726 = vpop.xlane.xlu0 %725
    %v727 = vsel %vm59, %v677, 0.0
    %728 = vadd.xlane.f32.xlu0 %v727
    %v729 = vpop.xlane.xlu0 %728
    %v730 = vsel %vm59, %v678, 0.0
    %731 = vadd.xlane.f32.xlu0 %v730
    %v732 = vpop.xlane.xlu0 %731
    %v733 = vsel %vm59, %v679, 0.0
    %734 = vadd.xlane.f32.xlu0 %v733
    %v735 = vpop.xlane.xlu0 %734
    %v736 = vsel %vm59, %v680, 0.0
    %737 = vadd.xlane.f32.xlu0 %v736
    %v738 = vpop.xlane.xlu0 %737
    %v739 = vsel %vm59, %v681, 0.0
    %740 = vadd.xlane.f32.xlu0 %v739
    %v741 = vpop.xlane.xlu0 %740
    %v742 = vsel %vm59, %v682, 0.0
    %743 = vadd.xlane.f32.xlu0 %v742
    %v744 = vpop.xlane.xlu0 %743
    %v745 = vsel %vm59, %v683, 0.0
    %746 = vadd.xlane.f32.xlu0 %v745
    %v747 = vpop.xlane.xlu0 %746
    %v748 = vsel %vm59, %v684, 0.0
    %749 = vadd.xlane.f32.xlu0 %v748
    %v750 = vpop.xlane.xlu0 %749
    %v751 = vsel %vm59, %v685, 0.0
    %752 = vadd.xlane.f32.xlu0 %v751
    %v753 = vpop.xlane.xlu0 %752
    %v754 = vsel %vm59, %v686, 0.0
    %755 = vadd.xlane.f32.xlu0 %v754
    %v756 = vpop.xlane.xlu0 %755
    %v757 = vsel %vm59, %v687, 0.0
    %758 = vadd.xlane.f32.xlu0 %v757
    %v759 = vpop.xlane.xlu0 %758
    %v760 = vsel %vm59, %v688, 0.0
    %761 = vadd.xlane.f32.xlu0 %v760
    %v762 = vpop.xlane.xlu0 %761
    %v763 = vsel %vm59, %v689, 0.0
    %764 = vadd.xlane.f32.xlu0 %v763
    %v765 = vpop.xlane.xlu0 %764
    %v766 = vsel %vm59, %v690, 0.0
    %767 = vadd.xlane.f32.xlu0 %v766
    %v768 = vpop.xlane.xlu0 %767
    %v769 = vsel %vm59, %v691, 0.0
    %770 = vadd.xlane.f32.xlu0 %v769
    %v771 = vpop.xlane.xlu0 %770
    %v772 = vsel %vm59, %v692, 0.0
    %773 = vadd.xlane.f32.xlu0 %v772
    %v774 = vpop.xlane.xlu0 %773
    %v775 = vsel %vm59, %v693, 0.0
    %776 = vadd.xlane.f32.xlu0 %v775
    %v777 = vpop.xlane.xlu0 %776
    %v778 = vsel %vm59, %v694, 0.0
    %779 = vadd.xlane.f32.xlu0 %v778
    %v780 = vpop.xlane.xlu0 %779
    %v781 = vsel %vm59, %v695, 0.0
    %782 = vadd.xlane.f32.xlu0 %v781
    %v783 = vpop.xlane.xlu0 %782
    %v784 = vsel %vm59, %v696, 0.0
    %785 = vadd.xlane.f32.xlu0 %v784
    %v786 = vpop.xlane.xlu0 %785
    %v787 = vsel %vm59, %v697, 0.0
    %788 = vadd.xlane.f32.xlu0 %v787
    %v789 = vpop.xlane.xlu0 %788
    %v790 = vsel %vm59, %v698, 0.0
    %791 = vadd.xlane.f32.xlu0 %v790
    %v792 = vpop.xlane.xlu0 %791
    %v793 = vsel %vm59, %v699, 0.0
    %794 = vadd.xlane.f32.xlu0 %v793
    %v795 = vpop.xlane.xlu0 %794
    %v796 = vsel %vm59, %v700, 0.0
    %797 = vadd.xlane.f32.xlu0 %v796
    %v798 = vpop.xlane.xlu0 %797
    %v799 = vsel %vm59, %v701, 0.0
    %800 = vadd.xlane.f32.xlu0 %v799
    %v801 = vpop.xlane.xlu0 %800
    %v802 = vsel %vm59, %v702, 0.0
    %803 = vadd.xlane.f32.xlu0 %v802
    %v804 = vpop.xlane.xlu0 %803
    %v805 = vsel %vm59, %v703, 0.0
    %806 = vadd.xlane.f32.xlu0 %v805
    %v807 = vpop.xlane.xlu0 %806
    %v808 = vsel %vm59, %v704, 0.0
    %809 = vadd.xlane.f32.xlu0 %v808
    %v810 = vpop.xlane.xlu0 %809
    %v811 = vsel %vm59, %v705, 0.0
    %812 = vadd.xlane.f32.xlu0 %v811
    %v813 = vpop.xlane.xlu0 %812
    %v814 = vsel %vm59, %v706, 0.0
    %815 = vadd.xlane.f32.xlu0 %v814
    %v816 = vpop.xlane.xlu0 %815
    %v817 = vsel %vm59, %v707, 0.0
    %818 = vadd.xlane.f32.xlu0 %v817
    %v819 = vpop.xlane.xlu0 %818
    %v820 = vsel %vm171, %v708, 0.0
    %821 = vadd.xlane.f32.xlu0 %v820
    %v822 = vpop.xlane.xlu0 %821
    %v823 = vadd.f32 %v62, %v404
    %v824 = vadd.f32 %v65, %v406
    %v825 = vadd.f32 %v68, %v408
    %v826 = vadd.f32 %v71, %v410
    %v827 = vadd.f32 %v74, %v412
    %v828 = vadd.f32 %v77, %v414
    %v829 = vadd.f32 %v80, %v416
    %v830 = vadd.f32 %v83, %v418
    %v831 = vadd.f32 %v86, %v420
    %v832 = vadd.f32 %v89, %v422
    %v833 = vadd.f32 %v92, %v424
    %v834 = vadd.f32 %v95, %v426
    %v835 = vadd.f32 %v98, %v428
    %v836 = vadd.f32 %v101, %v430
    %v837 = vadd.f32 %v104, %v432
    %v838 = vadd.f32 %v107, %v434
    %v839 = vadd.f32 %v110, %v436
    %v840 = vadd.f32 %v113, %v438
    %v841 = vadd.f32 %v116, %v440
    %v842 = vadd.f32 %v119, %v442
    %v843 = vadd.f32 %v122, %v444
    %v844 = vadd.f32 %v125, %v446
    %v845 = vadd.f32 %v128, %v448
    %v846 = vadd.f32 %v131, %v450
    %v847 = vadd.f32 %v134, %v452
    %v848 = vadd.f32 %v137, %v454
    %v849 = vadd.f32 %v140, %v456
    %v850 = vadd.f32 %v143, %v458
    %v851 = vadd.f32 %v146, %v460
    %v852 = vadd.f32 %v149, %v462
    %v853 = vadd.f32 %v152, %v464
    %v854 = vadd.f32 %v155, %v466
    %v855 = vadd.f32 %v158, %v468
    %v856 = vadd.f32 %v161, %v470
    %v857 = vadd.f32 %v164, %v472
    %v858 = vadd.f32 %v167, %v474
    %v859 = vadd.f32 %v170, %v476
    %v860 = vadd.f32 %v174, %v478
    %v861 = vsub.f32 %v823, %v711
    %v862 = vsub.f32 %v824, %v714
    %v863 = vsub.f32 %v825, %v717
    %v864 = vsub.f32 %v826, %v720
    %v865 = vsub.f32 %v827, %v723
    %v866 = vsub.f32 %v828, %v726
    %v867 = vsub.f32 %v829, %v729
    %v868 = vsub.f32 %v830, %v732
    %v869 = vsub.f32 %v831, %v735
    %v870 = vsub.f32 %v832, %v738
    %v871 = vsub.f32 %v833, %v741
    %v872 = vsub.f32 %v834, %v744
    %v873 = vsub.f32 %v835, %v747
    %v874 = vsub.f32 %v836, %v750
    %v875 = vsub.f32 %v837, %v753
    %v876 = vsub.f32 %v838, %v756
    %v877 = vsub.f32 %v839, %v759
    %v878 = vsub.f32 %v840, %v762
    %v879 = vsub.f32 %v841, %v765
    %v880 = vsub.f32 %v842, %v768
    %v881 = vsub.f32 %v843, %v771
    %v882 = vsub.f32 %v844, %v774
    %v883 = vsub.f32 %v845, %v777
    %v884 = vsub.f32 %v846, %v780
    %v885 = vsub.f32 %v847, %v783
    %v886 = vsub.f32 %v848, %v786
    %v887 = vsub.f32 %v849, %v789
    %v888 = vsub.f32 %v850, %v792
    %v889 = vsub.f32 %v851, %v795
    %v890 = vsub.f32 %v852, %v798
    %v891 = vsub.f32 %v853, %v801
    %v892 = vsub.f32 %v854, %v804
    %v893 = vsub.f32 %v855, %v807
    %v894 = vsub.f32 %v856, %v810
    %v895 = vsub.f32 %v857, %v813
    %v896 = vsub.f32 %v858, %v816
    %v897 = vsub.f32 %v859, %v819
    %v898 = vsub.f32 %v860, %v822
    %v899 = vld [vmem:[%s2] sm:$0xff]
    %v900 = vld [vmem:[%s2 + $0x8] sm:$0xff]
    %v901 = vld [vmem:[%s2 + $0x10] sm:$0xff]
    %v902 = vld [vmem:[%s2 + $0x18] sm:$0xff]
    %v903 = vld [vmem:[%s2 + $0x20] sm:$0xff]
    %v904 = vld [vmem:[%s2 + $0x28] sm:$0xff]
    %v905 = vld [vmem:[%s2 + $0x30] sm:$0xff]
    %v906 = vld [vmem:[%s2 + $0x38] sm:$0xff]
    %v907 = vld [vmem:[%s2 + $0x40] sm:$0xff]
    %v908 = vld [vmem:[%s2 + $0x48] sm:$0xff]
    %v909 = vld [vmem:[%s2 + $0x50] sm:$0xff]
    %v910 = vld [vmem:[%s2 + $0x58] sm:$0xff]
    %v911 = vld [vmem:[%s2 + $0x60] sm:$0xff]
    %v912 = vld [vmem:[%s2 + $0x68] sm:$0xff]
    %v913 = vld [vmem:[%s2 + $0x70] sm:$0xff]
    %v914 = vld [vmem:[%s2 + $0x78] sm:$0xff]
    %v915 = vld [vmem:[%s2 + $0x80] sm:$0xff]
    %v916 = vld [vmem:[%s2 + $0x88] sm:$0xff]
    %v917 = vld [vmem:[%s2 + $0x90] sm:$0xff]
    %v918 = vld [vmem:[%s2 + $0x98] sm:$0xff]
    %v919 = vld [vmem:[%s2 + $0xa0] sm:$0xff]
    %v920 = vld [vmem:[%s2 + $0xa8] sm:$0xff]
    %v921 = vld [vmem:[%s2 + $0xb0] sm:$0xff]
    %v922 = vld [vmem:[%s2 + $0xb8] sm:$0xff]
    %v923 = vld [vmem:[%s2 + $0xc0] sm:$0xff]
    %v924 = vld [vmem:[%s2 + $0xc8] sm:$0xff]
    %v925 = vld [vmem:[%s2 + $0xd0] sm:$0xff]
    %v926 = vld [vmem:[%s2 + $0xd8] sm:$0xff]
    %v927 = vld [vmem:[%s2 + $0xe0] sm:$0xff]
    %v928 = vld [vmem:[%s2 + $0xe8] sm:$0xff]
    %v929 = vld [vmem:[%s2 + $0xf0] sm:$0xff]
    %v930 = vld [vmem:[%s2 + $0xf8] sm:$0xff]
    %v931 = vld [vmem:[%s2 + $0x100] sm:$0xff]
    %v932 = vld [vmem:[%s2 + $0x108] sm:$0xff]
    %v933 = vld [vmem:[%s2 + $0x110] sm:$0xff]
    %v934 = vld [vmem:[%s2 + $0x118] sm:$0xff]
    %v935 = vld [vmem:[%s2 + $0x120] sm:$0xff]
    %v936 = vld [vmem:[%s2 + $0x128] sm:$0xf]
    %v937 = vmul.f32 %v899, %v861
    %v938 = vmul.f32 %v900, %v862
    %v939 = vmul.f32 %v901, %v863
    %v940 = vmul.f32 %v902, %v864
    %v941 = vmul.f32 %v903, %v865
    %v942 = vmul.f32 %v904, %v866
    %v943 = vmul.f32 %v905, %v867
    %v944 = vmul.f32 %v906, %v868
    %v945 = vmul.f32 %v907, %v869
    %v946 = vmul.f32 %v908, %v870
    %v947 = vmul.f32 %v909, %v871
    %v948 = vmul.f32 %v910, %v872
    %v949 = vmul.f32 %v911, %v873
    %v950 = vmul.f32 %v912, %v874
    %v951 = vmul.f32 %v913, %v875
    %v952 = vmul.f32 %v914, %v876
    %v953 = vmul.f32 %v915, %v877
    %v954 = vmul.f32 %v916, %v878
    %v955 = vmul.f32 %v917, %v879
    %v956 = vmul.f32 %v918, %v880
    %v957 = vmul.f32 %v919, %v881
    %v958 = vmul.f32 %v920, %v882
    %v959 = vmul.f32 %v921, %v883
    %v960 = vmul.f32 %v922, %v884
    %v961 = vmul.f32 %v923, %v885
    %v962 = vmul.f32 %v924, %v886
    %v963 = vmul.f32 %v925, %v887
    %v964 = vmul.f32 %v926, %v888
    %v965 = vmul.f32 %v927, %v889
    %v966 = vmul.f32 %v928, %v890
    %v967 = vmul.f32 %v929, %v891
    %v968 = vmul.f32 %v930, %v892
    %v969 = vmul.f32 %v931, %v893
    %v970 = vmul.f32 %v932, %v894
    %v971 = vmul.f32 %v933, %v895
    %v972 = vmul.f32 %v934, %v896
    %v973 = vmul.f32 %v935, %v897
    %v974 = vmul.f32 %v936, %v898
    %v975 = vsub.f32 1.4, %v937
    %v976 = vsub.f32 1.4, %v938
    %v977 = vsub.f32 1.4, %v939
    %v978 = vsub.f32 1.4, %v940
    %v979 = vsub.f32 1.4, %v941
    %v980 = vsub.f32 1.4, %v942
    %v981 = vsub.f32 1.4, %v943
    %v982 = vsub.f32 1.4, %v944
    %v983 = vsub.f32 1.4, %v945
    %v984 = vsub.f32 1.4, %v946
    %v985 = vsub.f32 1.4, %v947
    %v986 = vsub.f32 1.4, %v948
    %v987 = vsub.f32 1.4, %v949
    %v988 = vsub.f32 1.4, %v950
    %v989 = vsub.f32 1.4, %v951
    %v990 = vsub.f32 1.4, %v952
    %v991 = vsub.f32 1.4, %v953
    %v992 = vsub.f32 1.4, %v954
    %v993 = vsub.f32 1.4, %v955
    %v994 = vsub.f32 1.4, %v956
    %v995 = vsub.f32 1.4, %v957
    %v996 = vsub.f32 1.4, %v958
    %v997 = vsub.f32 1.4, %v959
    %v998 = vsub.f32 1.4, %v960
    %v999 = vsub.f32 1.4, %v961
    %v1000 = vsub.f32 1.4, %v962
    %v1001 = vsub.f32 1.4, %v963
    %v1002 = vsub.f32 1.4, %v964
    %v1003 = vsub.f32 1.4, %v965
    %v1004 = vsub.f32 1.4, %v966
    %v1005 = vsub.f32 1.4, %v967
    %v1006 = vsub.f32 1.4, %v968
    %v1007 = vsub.f32 1.4, %v969
    %v1008 = vsub.f32 1.4, %v970
    %v1009 = vsub.f32 1.4, %v971
    %v1010 = vsub.f32 1.4, %v972
    %v1011 = vsub.f32 1.4, %v973
    %v1012 = vsub.f32 1.4, %v974
    %v1013 = vmax.f32 %v975, 0.0
    %v1014 = vmax.f32 %v976, 0.0
    %v1015 = vmax.f32 %v977, 0.0
    %v1016 = vmax.f32 %v978, 0.0
    %v1017 = vmax.f32 %v979, 0.0
    %v1018 = vmax.f32 %v980, 0.0
    %v1019 = vmax.f32 %v981, 0.0
    %v1020 = vmax.f32 %v982, 0.0
    %v1021 = vmax.f32 %v983, 0.0
    %v1022 = vmax.f32 %v984, 0.0
    %v1023 = vmax.f32 %v985, 0.0
    %v1024 = vmax.f32 %v986, 0.0
    %v1025 = vmax.f32 %v987, 0.0
    %v1026 = vmax.f32 %v988, 0.0
    %v1027 = vmax.f32 %v989, 0.0
    %v1028 = vmax.f32 %v990, 0.0
    %v1029 = vmax.f32 %v991, 0.0
    %v1030 = vmax.f32 %v992, 0.0
    %v1031 = vmax.f32 %v993, 0.0
    %v1032 = vmax.f32 %v994, 0.0
    %v1033 = vmax.f32 %v995, 0.0
    %v1034 = vmax.f32 %v996, 0.0
    %v1035 = vmax.f32 %v997, 0.0
    %v1036 = vmax.f32 %v998, 0.0
    %v1037 = vmax.f32 %v999, 0.0
    %v1038 = vmax.f32 %v1000, 0.0
    %v1039 = vmax.f32 %v1001, 0.0
    %v1040 = vmax.f32 %v1002, 0.0
    %v1041 = vmax.f32 %v1003, 0.0
    %v1042 = vmax.f32 %v1004, 0.0
    %v1043 = vmax.f32 %v1005, 0.0
    %v1044 = vmax.f32 %v1006, 0.0
    %v1045 = vmax.f32 %v1007, 0.0
    %v1046 = vmax.f32 %v1008, 0.0
    %v1047 = vmax.f32 %v1009, 0.0
    %v1048 = vmax.f32 %v1010, 0.0
    %v1049 = vmax.f32 %v1011, 0.0
    %v1050 = vmax.f32 %v1012, 0.0
    %s1051 = smul.u32 0, 300
    %v1052 = vlaneseq
    %v1053 = vshrl.u32 %v1052, 7
    %v1054 = vadd.s32 %v1053, 8
    %v1055 = vadd.s32 %v1053, 16
    %v1056 = vadd.s32 %v1053, 24
    %v1057 = vadd.s32 %v1053, 32
    %v1058 = vadd.s32 %v1053, 40
    %v1059 = vadd.s32 %v1053, 48
    %v1060 = vadd.s32 %v1053, 56
    %v1061 = vadd.s32 %v1053, 64
    %v1062 = vadd.s32 %v1053, 72
    %v1063 = vadd.s32 %v1053, 80
    %v1064 = vadd.s32 %v1053, 88
    %v1065 = vadd.s32 %v1053, 96
    %v1066 = vadd.s32 %v1053, 104
    %v1067 = vadd.s32 %v1053, 112
    %v1068 = vadd.s32 %v1053, 120
    %v1069 = vadd.s32 %v1053, 128
    %v1070 = vadd.s32 %v1053, 136
    %v1071 = vadd.s32 %v1053, 144
    %v1072 = vadd.s32 %v1053, 152
    %v1073 = vadd.s32 %v1053, 160
    %v1074 = vadd.s32 %v1053, 168
    %v1075 = vadd.s32 %v1053, 176
    %v1076 = vadd.s32 %v1053, 184
    %v1077 = vadd.s32 %v1053, 192
    %v1078 = vadd.s32 %v1053, 200
    %v1079 = vadd.s32 %v1053, 208
    %v1080 = vadd.s32 %v1053, 216
    %v1081 = vadd.s32 %v1053, 224
    %v1082 = vadd.s32 %v1053, 232
    %v1083 = vadd.s32 %v1053, 240
    %v1084 = vadd.s32 %v1053, 248
    %v1085 = vadd.s32 %v1053, 256
    %v1086 = vadd.s32 %v1053, 264
    %v1087 = vadd.s32 %v1053, 272
    %v1088 = vadd.s32 %v1053, 280
    %v1089 = vadd.s32 %v1053, 288
    %v1090 = vadd.s32 %v1053, 296
    %v1091 = vstv %s1051
    %v1092 = vadd.s32 %v1091, %v1053
    %v1093 = vadd.s32 %v1091, %v1054
    %v1094 = vadd.s32 %v1091, %v1055
    %v1095 = vadd.s32 %v1091, %v1056
    %v1096 = vadd.s32 %v1091, %v1057
    %v1097 = vadd.s32 %v1091, %v1058
    %v1098 = vadd.s32 %v1091, %v1059
    %v1099 = vadd.s32 %v1091, %v1060
    %v1100 = vadd.s32 %v1091, %v1061
    %v1101 = vadd.s32 %v1091, %v1062
    %v1102 = vadd.s32 %v1091, %v1063
    %v1103 = vadd.s32 %v1091, %v1064
    %v1104 = vadd.s32 %v1091, %v1065
    %v1105 = vadd.s32 %v1091, %v1066
    %v1106 = vadd.s32 %v1091, %v1067
    %v1107 = vadd.s32 %v1091, %v1068
    %v1108 = vadd.s32 %v1091, %v1069
    %v1109 = vadd.s32 %v1091, %v1070
    %v1110 = vadd.s32 %v1091, %v1071
    %v1111 = vadd.s32 %v1091, %v1072
    %v1112 = vadd.s32 %v1091, %v1073
    %v1113 = vadd.s32 %v1091, %v1074
    %v1114 = vadd.s32 %v1091, %v1075
    %v1115 = vadd.s32 %v1091, %v1076
    %v1116 = vadd.s32 %v1091, %v1077
    %v1117 = vadd.s32 %v1091, %v1078
    %v1118 = vadd.s32 %v1091, %v1079
    %v1119 = vadd.s32 %v1091, %v1080
    %v1120 = vadd.s32 %v1091, %v1081
    %v1121 = vadd.s32 %v1091, %v1082
    %v1122 = vadd.s32 %v1091, %v1083
    %v1123 = vadd.s32 %v1091, %v1084
    %v1124 = vadd.s32 %v1091, %v1085
    %v1125 = vadd.s32 %v1091, %v1086
    %v1126 = vadd.s32 %v1091, %v1087
    %v1127 = vadd.s32 %v1091, %v1088
    %v1128 = vadd.s32 %v1091, %v1089
    %v1129 = vadd.s32 %v1091, %v1090
    %vm1130 = vcmp.lt.s32.totalorder %v1092, 300
    %vm1131 = vcmp.lt.s32.totalorder %v1093, 300
    %vm1132 = vcmp.lt.s32.totalorder %v1094, 300
    %vm1133 = vcmp.lt.s32.totalorder %v1095, 300
    %vm1134 = vcmp.lt.s32.totalorder %v1096, 300
    %vm1135 = vcmp.lt.s32.totalorder %v1097, 300
    %vm1136 = vcmp.lt.s32.totalorder %v1098, 300
    %vm1137 = vcmp.lt.s32.totalorder %v1099, 300
    %vm1138 = vcmp.lt.s32.totalorder %v1100, 300
    %vm1139 = vcmp.lt.s32.totalorder %v1101, 300
    %vm1140 = vcmp.lt.s32.totalorder %v1102, 300
    %vm1141 = vcmp.lt.s32.totalorder %v1103, 300
    %vm1142 = vcmp.lt.s32.totalorder %v1104, 300
    %vm1143 = vcmp.lt.s32.totalorder %v1105, 300
    %vm1144 = vcmp.lt.s32.totalorder %v1106, 300
    %vm1145 = vcmp.lt.s32.totalorder %v1107, 300
    %vm1146 = vcmp.lt.s32.totalorder %v1108, 300
    %vm1147 = vcmp.lt.s32.totalorder %v1109, 300
    %vm1148 = vcmp.lt.s32.totalorder %v1110, 300
    %vm1149 = vcmp.lt.s32.totalorder %v1111, 300
    %vm1150 = vcmp.lt.s32.totalorder %v1112, 300
    %vm1151 = vcmp.lt.s32.totalorder %v1113, 300
    %vm1152 = vcmp.lt.s32.totalorder %v1114, 300
    %vm1153 = vcmp.lt.s32.totalorder %v1115, 300
    %vm1154 = vcmp.lt.s32.totalorder %v1116, 300
    %vm1155 = vcmp.lt.s32.totalorder %v1117, 300
    %vm1156 = vcmp.lt.s32.totalorder %v1118, 300
    %vm1157 = vcmp.lt.s32.totalorder %v1119, 300
    %vm1158 = vcmp.lt.s32.totalorder %v1120, 300
    %vm1159 = vcmp.lt.s32.totalorder %v1121, 300
    %vm1160 = vcmp.lt.s32.totalorder %v1122, 300
    %vm1161 = vcmp.lt.s32.totalorder %v1123, 300
    %vm1162 = vcmp.lt.s32.totalorder %v1124, 300
    %vm1163 = vcmp.lt.s32.totalorder %v1125, 300
    %vm1164 = vcmp.lt.s32.totalorder %v1126, 300
    %vm1165 = vcmp.lt.s32.totalorder %v1127, 300
    %vm1166 = vcmp.lt.s32.totalorder %v1128, 300
    %vm1167 = vcmp.lt.s32.totalorder %v1129, 300
    %v1168 = vsel %vm1130, %v1013, 0.0
    %v1169 = vsel %vm1131, %v1014, 0.0
    %v1170 = vsel %vm1132, %v1015, 0.0
    %v1171 = vsel %vm1133, %v1016, 0.0
    %v1172 = vsel %vm1134, %v1017, 0.0
    %v1173 = vsel %vm1135, %v1018, 0.0
    %v1174 = vsel %vm1136, %v1019, 0.0
    %v1175 = vsel %vm1137, %v1020, 0.0
    %v1176 = vsel %vm1138, %v1021, 0.0
    %v1177 = vsel %vm1139, %v1022, 0.0
    %v1178 = vsel %vm1140, %v1023, 0.0
    %v1179 = vsel %vm1141, %v1024, 0.0
    %v1180 = vsel %vm1142, %v1025, 0.0
    %v1181 = vsel %vm1143, %v1026, 0.0
    %v1182 = vsel %vm1144, %v1027, 0.0
    %v1183 = vsel %vm1145, %v1028, 0.0
    %v1184 = vsel %vm1146, %v1029, 0.0
    %v1185 = vsel %vm1147, %v1030, 0.0
    %v1186 = vsel %vm1148, %v1031, 0.0
    %v1187 = vsel %vm1149, %v1032, 0.0
    %v1188 = vsel %vm1150, %v1033, 0.0
    %v1189 = vsel %vm1151, %v1034, 0.0
    %v1190 = vsel %vm1152, %v1035, 0.0
    %v1191 = vsel %vm1153, %v1036, 0.0
    %v1192 = vsel %vm1154, %v1037, 0.0
    %v1193 = vsel %vm1155, %v1038, 0.0
    %v1194 = vsel %vm1156, %v1039, 0.0
    %v1195 = vsel %vm1157, %v1040, 0.0
    %v1196 = vsel %vm1158, %v1041, 0.0
    %v1197 = vsel %vm1159, %v1042, 0.0
    %v1198 = vsel %vm1160, %v1043, 0.0
    %v1199 = vsel %vm1161, %v1044, 0.0
    %v1200 = vsel %vm1162, %v1045, 0.0
    %v1201 = vsel %vm1163, %v1046, 0.0
    %v1202 = vsel %vm1164, %v1047, 0.0
    %v1203 = vsel %vm1165, %v1048, 0.0
    %v1204 = vsel %vm1166, %v1049, 0.0
    %v1205 = vsel %vm1167, %v1050, 0.0
    %v1206 = vld [vmem:[#allocation2] sm:$0x1]
    %vm1207 = vcmask 7168
    %v1208 = vsel %vm1207, %v1168, 0.0
    %v1209 = vsel %vm1207, %v1169, 0.0
    %v1210 = vadd.f32 %v1208, %v1209
    %v1211 = vsel %vm1207, %v1170, 0.0
    %v1212 = vadd.f32 %v1210, %v1211
    %v1213 = vsel %vm1207, %v1171, 0.0
    %v1214 = vadd.f32 %v1212, %v1213
    %v1215 = vsel %vm1207, %v1172, 0.0
    %v1216 = vadd.f32 %v1214, %v1215
    %v1217 = vsel %vm1207, %v1173, 0.0
    %v1218 = vadd.f32 %v1216, %v1217
    %v1219 = vsel %vm1207, %v1174, 0.0
    %v1220 = vadd.f32 %v1218, %v1219
    %v1221 = vsel %vm1207, %v1175, 0.0
    %v1222 = vadd.f32 %v1220, %v1221
    %v1223 = vsel %vm1207, %v1176, 0.0
    %v1224 = vadd.f32 %v1222, %v1223
    %v1225 = vsel %vm1207, %v1177, 0.0
    %v1226 = vadd.f32 %v1224, %v1225
    %v1227 = vsel %vm1207, %v1178, 0.0
    %v1228 = vadd.f32 %v1226, %v1227
    %v1229 = vsel %vm1207, %v1179, 0.0
    %v1230 = vadd.f32 %v1228, %v1229
    %v1231 = vsel %vm1207, %v1180, 0.0
    %v1232 = vadd.f32 %v1230, %v1231
    %v1233 = vsel %vm1207, %v1181, 0.0
    %v1234 = vadd.f32 %v1232, %v1233
    %v1235 = vsel %vm1207, %v1182, 0.0
    %v1236 = vadd.f32 %v1234, %v1235
    %v1237 = vsel %vm1207, %v1183, 0.0
    %v1238 = vadd.f32 %v1236, %v1237
    %v1239 = vsel %vm1207, %v1184, 0.0
    %v1240 = vadd.f32 %v1238, %v1239
    %v1241 = vsel %vm1207, %v1185, 0.0
    %v1242 = vadd.f32 %v1240, %v1241
    %v1243 = vsel %vm1207, %v1186, 0.0
    %v1244 = vadd.f32 %v1242, %v1243
    %v1245 = vsel %vm1207, %v1187, 0.0
    %v1246 = vadd.f32 %v1244, %v1245
    %v1247 = vsel %vm1207, %v1188, 0.0
    %v1248 = vadd.f32 %v1246, %v1247
    %v1249 = vsel %vm1207, %v1189, 0.0
    %v1250 = vadd.f32 %v1248, %v1249
    %v1251 = vsel %vm1207, %v1190, 0.0
    %v1252 = vadd.f32 %v1250, %v1251
    %v1253 = vsel %vm1207, %v1191, 0.0
    %v1254 = vadd.f32 %v1252, %v1253
    %v1255 = vsel %vm1207, %v1192, 0.0
    %v1256 = vadd.f32 %v1254, %v1255
    %v1257 = vsel %vm1207, %v1193, 0.0
    %v1258 = vadd.f32 %v1256, %v1257
    %v1259 = vsel %vm1207, %v1194, 0.0
    %v1260 = vadd.f32 %v1258, %v1259
    %v1261 = vsel %vm1207, %v1195, 0.0
    %v1262 = vadd.f32 %v1260, %v1261
    %v1263 = vsel %vm1207, %v1196, 0.0
    %v1264 = vadd.f32 %v1262, %v1263
    %v1265 = vsel %vm1207, %v1197, 0.0
    %v1266 = vadd.f32 %v1264, %v1265
    %v1267 = vsel %vm1207, %v1198, 0.0
    %v1268 = vadd.f32 %v1266, %v1267
    %v1269 = vsel %vm1207, %v1199, 0.0
    %v1270 = vadd.f32 %v1268, %v1269
    %v1271 = vsel %vm1207, %v1200, 0.0
    %v1272 = vadd.f32 %v1270, %v1271
    %v1273 = vsel %vm1207, %v1201, 0.0
    %v1274 = vadd.f32 %v1272, %v1273
    %v1275 = vsel %vm1207, %v1202, 0.0
    %v1276 = vadd.f32 %v1274, %v1275
    %v1277 = vsel %vm1207, %v1203, 0.0
    %v1278 = vadd.f32 %v1276, %v1277
    %v1279 = vsel %vm1207, %v1204, 0.0
    %v1280 = vadd.f32 %v1278, %v1279
    %vm1281 = vcmask 3072
    %v1282 = vsel %vm1281, %v1205, 0.0
    %v1283 = vadd.f32 %v1280, %v1282
    %1284 = vadd.xlane.f32.xlu0 %v1283
    %v1285 = vpop.xlane.xlu0 %1284
    %v1286 = vrot.slane %v1285, 4
    %v1287 = vadd.f32 %v1285, %v1286
    %v1288 = vrot.slane %v1287, 2
    %v1289 = vadd.f32 %v1287, %v1288
    %v1290 = vrot.slane %v1289, 1
    %v1291 = vadd.f32 %v1289, %v1290
    %s1292 = vtos %v1291
    %v1293 = vstv %s1292
    %v1294 = vadd.f32 %v1206, %v1293
    %vm1295 = vcmask 0
    %1296 = vst.msk [vmem:[#allocation2] sm:$0x1] %vm1295, %v1294
    // Predicated region
    $region18: #{tpu_custom_call.1} parent=1 // pred_check
      %p1297 = pneg %p15
    $region19: #{tpu_custom_call.1} parent=1 // pred_check_branch
      %1299 = sbr.rel (%p1297) target = $region21
    $region20: #{tpu_custom_call.1} parent=1 // pred_region
      %v1300 = vld [vmem:[#allocation2] sm:$0x1]
      %1301 = vst.msk [vmem:[#allocation3] sm:$0x1] %vm1295, %v1300
    $region21: #{tpu_custom_call.1} parent=1 // pred_fallthru
      _
    // Predicated region
    $region22: #{tpu_custom_call.1} parent=1 // pred_check
      _
    $region23: #{tpu_custom_call.1} parent=1 // pred_check_branch
      %1303 = sbr.rel (0) target = $region25
    $region24: #{tpu_custom_call.1} parent=1 // pred_region
      %s1305 = ssub.s32 16, 16
      %1306 = vsyncadd [#allocation4], %s1305
      %s1308 = sshll.u32 [#allocation3], 4
      %s1309 = int_to_ptr.vmem [resolvable:$true] %s1308
      %1311 = dma.vmem_to_hbm [thread:$0]  %s1309, 16, %s3, [#allocation4]
    $region25: #{tpu_custom_call.1} parent=1 // pred_fallthru
      _
    // Predicated region
    $region26: #{tpu_custom_call.1} parent=1 // pred_check
      _
    $region27: #{tpu_custom_call.1} parent=1 // pred_check_branch
      %1313 = sbr.rel (0) target = $region29
    $region28: #{tpu_custom_call.1} parent=1 // pred_region
      %1314 = dma.done [#allocation4], 16
    $region29: #{tpu_custom_call.1} parent=1 // pred_fallthru
      _
    %1315 = vsyncpa [#allocation4], 1

</llo_original>
